<compile_context>
chip_gen: v7x
topology: tpu7x:2x2x1
jax: 0.10.0
libtpu: 0.0.40
codegen_flags: <defaults>
</compile_context>

<pallas_src>
import math
import functools

import jax
import jax.numpy as jnp
from jax.experimental import pallas as pl
from jax.experimental.pallas import tpu as pltpu

# Block / Decoder construct nn.LayerNorm(dim, eps=1e-06) explicitly.
EPS = 1e-6

_STACK_KEYS = ("wsx", "wss", "bskip", "g1", "be1",
               "wqkv", "wproj", "bproj",
               "g2", "be2", "wfc1", "bfc1", "wfc2", "bfc2")


# ----------------------------------------------------------------------------
# in-kernel helpers (f32 math)
# ----------------------------------------------------------------------------
def _layernorm(x, g, b):
    mu = jnp.mean(x, axis=-1, keepdims=True)
    xc = x - mu
    var = jnp.mean(xc * xc, axis=-1, keepdims=True)
    return xc * jax.lax.rsqrt(var + EPS) * g + b


def _erf(x):
    # Abramowitz & Stegun 7.1.26 polynomial (|err| < 1.5e-7): exp on the EUP,
    # rest is a short VALU chain -- lowers on v5e/v6e/v7x without relying on a
    # native erf rule.
    ax = jnp.abs(x)
    t = 1.0 / (1.0 + 0.3275911 * ax)
    poly = t * (0.254829592 + t * (-0.284496736 + t * (1.421413741
                + t * (-1.453152027 + t * 1.061405429))))
    return jnp.sign(x) * (1.0 - poly * jnp.exp(-ax * ax))


def _gelu(x):  # exact GELU (nn.GELU default), via the erf polynomial above
    # TODO(synk): on v5e, if the VALU slot saturates here, switch to tanh-approx
    # GELU / bf16 evaluation per the perf review.
    return 0.5 * x * (1.0 + _erf(x * (1.0 / math.sqrt(2.0))))


def _vmem_limit_bytes():
    cap = 128 * 1024 * 1024
    try:  # generation-aware: ~48 MiB on v7x (64 MiB physical), ~110 MiB on v5e/v6e
        cap = int(pltpu.get_tpu_info().vmem_capacity_bytes)
    except Exception:
        pass
    return max(32 * 1024 * 1024, min(cap - 16 * 1024 * 1024, 110 * 1024 * 1024))


# ----------------------------------------------------------------------------
# fused time / cond embedding (two SiLU MLPs + add in a single kernel)
# ----------------------------------------------------------------------------
def _time_embed_kernel(ff_ref, w1, b1, w2, b2, o_ref):
    h = jnp.dot(ff_ref[...], w1[...], preferred_element_type=jnp.float32) + b1[...]
    h = h * jax.nn.sigmoid(h)                       # SiLU
    o_ref[...] = jnp.dot(h, w2[...], preferred_element_type=jnp.float32) + b2[...]


def _time_cond_embed_kernel(ff_ref, fl_ref, tw1, tb1, tw2, tb2,
                            cw1, cb1, cw2, cb2, o_ref):
    h = jnp.dot(ff_ref[...], tw1[...], preferred_element_type=jnp.float32) + tb1[...]
    h = h * jax.nn.sigmoid(h)
    t = jnp.dot(h, tw2[...], preferred_element_type=jnp.float32) + tb2[...]
    g = jnp.dot(fl_ref[...], cw1[...], preferred_element_type=jnp.float32) + cb1[...]
    g = g * jax.nn.sigmoid(g)
    c = jnp.dot(g, cw2[...], preferred_element_type=jnp.float32) + cb2[...]
    # TODO(synk): NoScaleDropout(0.1) on the cond embedding is identity at eval.
    o_ref[...] = t + c


def run_time_cond_embed(ff, fluid, p):
    B = ff.shape[0]
    D = p["te_w2"].shape[1]
    if fluid is None:
        return pl.pallas_call(
            _time_embed_kernel,
            out_shape=jax.ShapeDtypeStruct((B, D), jnp.float32),
        )(ff, p["te_w1"], p["te_b1"], p["te_w2"], p["te_b2"])
    return pl.pallas_call(
        _time_cond_embed_kernel,
        out_shape=jax.ShapeDtypeStruct((B, D), jnp.float32),
    )(ff, fluid, p["te_w1"], p["te_b1"], p["te_w2"], p["te_b2"],
      p["ce_w1"], p["ce_b1"], p["ce_w2"], p["ce_b2"])


# ----------------------------------------------------------------------------
# fused decoder: all UViT Blocks + final LayerNorm + decoder_pred, one call.
# grid = (batch_tiles, n_blocks); each step works on a [Mt, D] slab with
# Mt = batch_tile * L.  Attention is computed per batch inside the tile, so no
# cross-batch mask is needed.  The residual stream lives in a VMEM scratch.
# ----------------------------------------------------------------------------
def _decoder_blocks_kernel(x0_hbm, skip_ref,
                           wsx_ref, wss_ref, bskip_ref, g1_ref, be1_ref,
                           wqkv_ref, wproj_ref, bproj_ref, g2_ref, be2_ref,
                           wfc1_ref, bfc1_ref, wfc2_ref, bfc2_ref,
                           gn_ref, bn_ref, wp_ref, bp_ref,
                           o_ref, acc_ref, *, num_heads, batch_tile, seq_len):
    bt = pl.program_id(0)
    blk = pl.program_id(1)

    # x0 is read exactly once per batch tile: DMA it straight into the residual
    # accumulator instead of keeping a resident VMEM copy across all blocks.
    @pl.when(blk == 0)
    def _():
        pltpu.sync_copy(x0_hbm.at[bt], acc_ref)

    x = acc_ref[...]                                  # [Mt, D] f32 residual stream
    skip = skip_ref[0, 0]                             # [Mt, D] bf16 (streamed per step)

    # skip_linear(cat([x, skip], -1)) == x @ W_top + skip @ W_bot + b  (no lane concat)
    x = (jnp.dot(x.astype(jnp.bfloat16), wsx_ref[0],
                 preferred_element_type=jnp.float32)
         + jnp.dot(skip, wss_ref[0], preferred_element_type=jnp.float32)
         + bskip_ref[0])

    # ---------------- attention branch ----------------
    D = x.shape[-1]
    Dh = D // num_heads
    h = _layernorm(x, g1_ref[0], be1_ref[0]).astype(jnp.bfloat16)       # [Mt, D]
    # ONE fused lane-dense QKV matmul (1/sqrt(Dh) folded into the q columns).
    qkv = jnp.dot(h, wqkv_ref[0], preferred_element_type=jnp.bfloat16)  # [Mt, 3D]

    outs = []
    for b in range(batch_tile):                      # attention is batch-local
        rows = slice(b * seq_len, (b + 1) * seq_len)
        heads = []
        for hh in range(num_heads):
            q = qkv[rows, hh * Dh:(hh + 1) * Dh]                       # [L, Dh] bf16
            k = qkv[rows, D + hh * Dh:D + (hh + 1) * Dh]
            v = qkv[rows, 2 * D + hh * Dh:2 * D + (hh + 1) * Dh]
            s = jax.lax.dot_general(q, k, (((1,), (1,)), ((), ())),
                                    preferred_element_type=jnp.float32)  # [L, L] f32
            s = s - jnp.max(s, axis=-1, keepdims=True)
            p = jnp.exp(s)
            # approx reciprocal runs on the EUP; ~2^-12 rel err (below bf16 matmul noise)
            p = p * pl.reciprocal(jnp.sum(p, axis=-1, keepdims=True), approx=True)
            heads.append(jnp.dot(p.astype(jnp.bfloat16), v,
                                 preferred_element_type=jnp.bfloat16))   # [L, Dh]
        outs.append(jnp.concatenate(heads, axis=-1))                     # [L, D]
    o = outs[0] if batch_tile == 1 else jnp.concatenate(outs, axis=0)    # [Mt, D] bf16
    # single out-projection matmul on the lane-concatenated heads
    x = x + jnp.dot(o, wproj_ref[0], preferred_element_type=jnp.float32) + bproj_ref[0]

    # ---------------- MLP branch ----------------
    h2 = _layernorm(x, g2_ref[0], be2_ref[0]).astype(jnp.bfloat16)
    a = jnp.dot(h2, wfc1_ref[0], preferred_element_type=jnp.float32) + bfc1_ref[0]
    a = _gelu(a).astype(jnp.bfloat16)
    x = x + jnp.dot(a, wfc2_ref[0], preferred_element_type=jnp.float32) + bfc2_ref[0]

    acc_ref[...] = x

    # ---------------- final LayerNorm + decoder_pred (last block only) ----------------
    @pl.when(blk == pl.num_programs(1) - 1)
    def _():
        hn = _layernorm(x, gn_ref[...], bn_ref[...]).astype(jnp.bfloat16)
        o_ref[0] = (jnp.dot(hn, wp_ref[...], preferred_element_type=jnp.float32)
                    + bp_ref[...])
        # TODO(synk): if the pred store shows in profiles at production sizes,
        # emit a lane-dense [P, Mt] output instead (P is only patch^2*C lanes).


def _const_spec(a):
    nd = a.ndim
    return pl.BlockSpec(a.shape, lambda bt, i, _nd=nd: (0,) * _nd)


def _stacked_spec(a):
    nd = a.ndim
    return pl.BlockSpec((1,) + a.shape[1:],
                        lambda bt, i, _nd=nd: (i,) + (0,) * (_nd - 1))


def run_decoder_blocks(x0, skip_stack, stacked, final, *, num_heads, batch_tile=1):
    nb, B, L, D = skip_stack.shape
    assert B % batch_tile == 0
    nbt = B // batch_tile                       # leading "parallel" grid axis
    Mt = batch_tile * L
    P = final["pred_w"].shape[1]

    x0_t = x0.reshape(nbt, Mt, D)                        # f32, consumed via pl.ANY
    skip_t = skip_stack.reshape(nb, nbt, Mt, D)          # bf16 streamed activations

    stacked_list = [stacked[k] for k in _STACK_KEYS]
    final_list = [final["norm_g"], final["norm_b"], final["pred_w"], final["pred_b"]]

    in_specs = ([pl.BlockSpec(memory_space=pl.ANY),                       # x0 (HBM)
                 pl.BlockSpec((1, 1, Mt, D), lambda bt, i: (i, bt, 0, 0))]  # skip
                + [_stacked_spec(a) for a in stacked_list]
                + [_const_spec(a) for a in final_list])
    # TODO(synk): at production D (>=768) on v7x, single-buffer the small stacked
    # params (biases / LN gammas) and/or tile wfc1/wfc2 along the hidden dim so
    # the double-buffered weight set fits 64 MiB; unnecessary at this toy size.

    out = pl.pallas_call(
        functools.partial(_decoder_blocks_kernel, num_heads=num_heads,
                          batch_tile=batch_tile, seq_len=L),
        out_shape=jax.ShapeDtypeStruct((nbt, Mt, P), jnp.float32),
        grid=(nbt, nb),
        in_specs=in_specs,
        out_specs=pl.BlockSpec((1, Mt, P), lambda bt, i: (bt, 0, 0)),
        scratch_shapes=[pltpu.VMEM((Mt, D), jnp.float32)],
        compiler_params=pltpu.CompilerParams(
            dimension_semantics=("parallel", "arbitrary"),
            vmem_limit_bytes=_vmem_limit_bytes()),
    )(x0_t, skip_t, *stacked_list, *final_list)
    return out.reshape(nbt, batch_tile, L, P).reshape(B, L, P)


# ----------------------------------------------------------------------------
# final 3x3 conv (padding=1) as an im2col matmul.
# Input layout: [Cin, B*H*W] (spatial flattened onto lanes -> lane-dense).
# The 9 validity masks are built in-kernel from two int32 coordinate rows
# (no [9,1,N] f32 mask tensor streamed from HBM).
# ----------------------------------------------------------------------------
def _conv3x3_kernel(x_ref, w_ref, ii_ref, jj_ref, b_ref, o_ref, *, H, W):
    x = x_ref[...]                                   # [Cin, N] f32
    ii = ii_ref[...]                                 # [1, N] int32 row index
    jj = jj_ref[...]                                 # [1, N] int32 col index
    pieces = []
    for di in (-1, 0, 1):
        for dj in (-1, 0, 1):
            k = di * W + dj
            shifted = x if k == 0 else jnp.roll(x, shift=-k, axis=1)
            valid = ((ii + di >= 0) & (ii + di < H)
                     & (jj + dj >= 0) & (jj + dj < W))        # [1, N] bool
            pieces.append(jnp.where(valid, shifted, 0.0))     # invalid taps -> 0
    cols = jnp.concatenate(pieces, axis=0)           # [9*Cin, N]
    o_ref[...] = (jnp.dot(w_ref[...], cols, preferred_element_type=jnp.float32)
                  + b_ref[...])


def run_conv3x3(img, conv_w, conv_b):
    B, C, H, W = img.shape
    Co = conv_w.shape[0]
    N = B * H * W
    xcf = jnp.transpose(img, (1, 0, 2, 3)).reshape(C, N)            # [Cin, N]
    # weight as [Cout, 9*Cin], tap-major to match the kernel's tap ordering
    w_mat = jnp.transpose(conv_w, (0, 2, 3, 1)).reshape(Co, 9 * C)
    b_col = conv_b.reshape(Co, 1)
    n = jnp.arange(N, dtype=jnp.int32)
    ii = ((n // W) % H).reshape(1, N).astype(jnp.int32)
    jj = (n % W).reshape(1, N).astype(jnp.int32)
    out = pl.pallas_call(
        functools.partial(_conv3x3_kernel, H=H, W=W),
        out_shape=jax.ShapeDtypeStruct((Co, N), jnp.float32),
    )(xcf, w_mat, ii, jj, b_col)
    return jnp.transpose(out.reshape(Co, B, H, W), (1, 0, 2, 3))


# ----------------------------------------------------------------------------
# plain-JAX glue: MPFourier features and unpatchify
# ----------------------------------------------------------------------------
def mp_fourier(t, freqs, phases):
    y = t.astype(jnp.float32)[:, None] * freqs[None, :] + phases[None, :]
    return jnp.cos(y) * math.sqrt(2.0)


def unpatchify(x, channels):
    B, N, pd = x.shape
    p = int((pd // channels) ** 0.5)
    h = w = int(N ** 0.5)
    assert h * w == N and p * p * channels == pd
    x = x.reshape(B, h, w, p, p, channels)
    x = jnp.transpose(x, (0, 5, 1, 3, 2, 4))          # B C h p1 w p2
    return x.reshape(B, channels, h * p, w * p)


# ----------------------------------------------------------------------------
# parameter construction (deterministic; mirrors Decoder.initialize_weights)
# ----------------------------------------------------------------------------
def xavier_t(key, fan_in, fan_out):
    bound = math.sqrt(6.0 / (fan_in + fan_out))
    return jax.random.uniform(key, (fan_in, fan_out), jnp.float32, -bound, bound)


def make_params(key, *, D, num_heads, depth, mlp_ratio, in_conds, patch_size, out_chans):
    ks = iter(jax.random.split(key, 64))
    Dh = int(D * mlp_ratio)
    patch_dim = patch_size ** 2 * out_chans
    p = {
        "fourier_freqs": 2 * math.pi * jax.random.normal(next(ks), (D,), jnp.float32),
        "fourier_phases": 2 * math.pi * jax.random.uniform(next(ks), (D,), jnp.float32),
        "te_w1": xavier_t(next(ks), D, 2 * D), "te_b1": jnp.zeros((1, 2 * D), jnp.float32),
        "te_w2": xavier_t(next(ks), 2 * D, D), "te_b2": jnp.zeros((1, D), jnp.float32),
        "ce_w1": xavier_t(next(ks), in_conds, 2 * D), "ce_b1": jnp.zeros((1, 2 * D), jnp.float32),
        "ce_w2": xavier_t(next(ks), 2 * D, D), "ce_b2": jnp.zeros((1, D), jnp.float32),
        "norm_g": jnp.ones((1, D), jnp.float32), "norm_b": jnp.zeros((1, D), jnp.float32),
        "pred_w": xavier_t(next(ks), D, patch_dim), "pred_b": jnp.zeros((1, patch_dim), jnp.float32),
    }
    blocks = []
    for _ in range(depth // 2):
        blocks.append({
            "wskip": xavier_t(next(ks), 2 * D, D), "bskip": jnp.zeros((1, D), jnp.float32),
            "g1": jnp.ones((1, D), jnp.float32), "be1": jnp.zeros((1, D), jnp.float32),
            "wqkv": xavier_t(next(ks), D, 3 * D),                   # qkv_bias=False
            "wproj": xavier_t(next(ks), D, D), "bproj": jnp.zeros((1, D), jnp.float32),
            "g2": jnp.ones((1, D), jnp.float32), "be2": jnp.zeros((1, D), jnp.float32),
            "wfc1": xavier_t(next(ks), D, Dh), "bfc1": jnp.zeros((1, Dh), jnp.float32),
            "wfc2": xavier_t(next(ks), Dh, D), "bfc2": jnp.zeros((1, D), jnp.float32),
        })
    p["blocks"] = blocks
    # final_layer Conv2d keeps PyTorch default init (not touched by _init_weights)
    fan_in = out_chans * 9
    kbound = 1.0 / math.sqrt(fan_in)
    p["conv_w"] = jax.random.uniform(next(ks), (out_chans, out_chans, 3, 3),
                                     jnp.float32, -kbound, kbound)
    p["conv_b"] = jax.random.uniform(next(ks), (out_chans,), jnp.float32, -kbound, kbound)
    return p


def pack_decoder_params(params, num_heads):
    """Stack per-block weights for the fused kernel; bf16 matmul weights."""
    blocks = params["blocks"]
    D = params["norm_g"].shape[-1]
    Dh = D // num_heads
    scale = Dh ** (-0.5)

    def per_block(blk):
        wqkv = blk["wqkv"]                         # [D, 3D], columns = q|k|v, (head, Dh)
        wqkv_scaled = jnp.concatenate([wqkv[:, :D] * scale,    # fold 1/sqrt(Dh) into Wq
                                       wqkv[:, D:]], axis=1)
        return dict(
            wsx=blk["wskip"][:D].astype(jnp.bfloat16),
            wss=blk["wskip"][D:].astype(jnp.bfloat16),
            bskip=blk["bskip"],
            g1=blk["g1"], be1=blk["be1"],
            wqkv=wqkv_scaled.astype(jnp.bfloat16),
            wproj=blk["wproj"].astype(jnp.bfloat16),
            bproj=blk["bproj"],
            g2=blk["g2"], be2=blk["be2"],
            wfc1=blk["wfc1"].astype(jnp.bfloat16), bfc1=blk["bfc1"],
            wfc2=blk["wfc2"].astype(jnp.bfloat16), bfc2=blk["bfc2"])

    per = [per_block(b) for b in blocks]
    stacked = {k: jnp.stack([pb[k] for pb in per], axis=0) for k in _STACK_KEYS}
    final = dict(norm_g=params["norm_g"], norm_b=params["norm_b"],
                 pred_w=params["pred_w"].astype(jnp.bfloat16),
                 pred_b=params["pred_b"])
    return stacked, final


# ----------------------------------------------------------------------------
# Decoder forward (eval mode; dropouts are identity)
# ----------------------------------------------------------------------------
def decoder_forward(params, x, skips, cond, cond_skips, timesteps,
                    fluid_condition=None, *, num_heads, out_chans, extras=1):
    B, L, D = x.shape

    ff = mp_fourier(timesteps, params["fourier_freqs"], params["fourier_phases"])
    time_token = run_time_cond_embed(ff, fluid_condition, params)

    # prologue glue (tiny XLA ops)
    x = x + cond
    x = x.at[:, 0, :].add(time_token)
    x0 = x                                                # [B, L, D] f32

    # block i consumes skips[-(i+1)] + cond_skips[-(i+1)]  (matches .pop());
    # stored bf16: it only ever feeds a bf16 matmul -> halves HBM/VMEM traffic.
    nb = len(params["blocks"])
    skip_stack = jnp.stack(
        [skips[-(i + 1)] + cond_skips[-(i + 1)] for i in range(nb)],
        axis=0).astype(jnp.bfloat16)                      # [nb, B, L, D]

    stacked, final = pack_decoder_params(params, num_heads)
    pred = run_decoder_blocks(x0, skip_stack, stacked, final,
                              num_heads=num_heads, batch_tile=1)   # [B, L, patch_dim]

    pred = pred[:, extras:, :]
    img = unpatchify(pred, out_chans)
    img = run_conv3x3(img, params["conv_w"], params["conv_b"])
    return img


# ----------------------------------------------------------------------------
if __name__ == "__main__":
    # small config consistent with the module
    B = 2
    embed_dim = 32
    num_heads = 4
    depth = 4                 # -> 2 out_blocks
    mlp_ratio = 4.0
    patch_size = 2
    out_chans = 3
    in_conds = 1
    num_patches = 16          # 4x4 grid of 2x2 patches -> 8x8 image
    L = 1 + num_patches       # extras=1 (time token)

    key = jax.random.PRNGKey(0)
    kp, kx, kc, ks1, ks2, kcs1, kcs2, kt, kf = jax.random.split(key, 9)

    params = make_params(kp, D=embed_dim, num_heads=num_heads, depth=depth,
                         mlp_ratio=mlp_ratio, in_conds=in_conds,
                         patch_size=patch_size, out_chans=out_chans)

    x = jax.random.normal(kx, (B, L, embed_dim), jnp.float32)
    cond = jax.random.normal(kc, (B, L, embed_dim), jnp.float32)
    skips = [jax.random.normal(ks1, (B, L, embed_dim), jnp.float32),
             jax.random.normal(ks2, (B, L, embed_dim), jnp.float32)]
    cond_skips = [jax.random.normal(kcs1, (B, L, embed_dim), jnp.float32),
                  jax.random.normal(kcs2, (B, L, embed_dim), jnp.float32)]
    timesteps = jax.random.uniform(kt, (B,), jnp.float32)
    fluid_condition = jax.random.normal(kf, (B, in_conds), jnp.float32)

    out = decoder_forward(params, x, skips, cond, cond_skips, timesteps,
                          fluid_condition, num_heads=num_heads, out_chans=out_chans)
    out = jax.block_until_ready(out)
    assert out.shape == (B, out_chans, 8, 8), out.shape
    assert bool(jnp.isfinite(out).all()), "non-finite values in output"
    print("KERNEL_OK")
</pallas_src>

<mosaic_0001>
module attributes {stable_mosaic.version = 11 : i64} {
  func.func @_time_cond_embed_kernel(%arg0: memref<2x32xf32, #tpu.memory_space<vmem>>, %arg1: memref<2x1xf32, #tpu.memory_space<vmem>>, %arg2: memref<32x64xf32, #tpu.memory_space<vmem>>, %arg3: memref<1x64xf32, #tpu.memory_space<vmem>>, %arg4: memref<64x32xf32, #tpu.memory_space<vmem>>, %arg5: memref<1x32xf32, #tpu.memory_space<vmem>>, %arg6: memref<1x64xf32, #tpu.memory_space<vmem>>, %arg7: memref<1x64xf32, #tpu.memory_space<vmem>>, %arg8: memref<64x32xf32, #tpu.memory_space<vmem>>, %arg9: memref<1x32xf32, #tpu.memory_space<vmem>>, %arg10: memref<2x32xf32, #tpu.memory_space<vmem>>) attributes {dimension_semantics = [], scalar_prefetch = 0 : i64, scratch_operands = 0 : i64, tpu.core_type = #tpu.core_type<tc>} {
    %c0 = arith.constant 0 : index
    %c0_0 = arith.constant 0 : index
    %0 = vector.load %arg0[%c0, %c0_0] : memref<2x32xf32, #tpu.memory_space<vmem>>, vector<2x32xf32>
    %c0_1 = arith.constant 0 : index
    %c0_2 = arith.constant 0 : index
    %1 = vector.load %arg2[%c0_1, %c0_2] : memref<32x64xf32, #tpu.memory_space<vmem>>, vector<32x64xf32>
    %cst = arith.constant dense<0.000000e+00> : vector<2x64xf32>
    %2 = tpu.matmul %0, %1, %cst {dimension_numbers = #tpu.dot_dimension_numbers<[1], [0], [0], [1], [0, 0, 1, 1], [], []>} : vector<2x32xf32>, vector<32x64xf32>, vector<2x64xf32> -> vector<2x64xf32>
    %c0_3 = arith.constant 0 : index
    %c0_4 = arith.constant 0 : index
    %3 = vector.load %arg3[%c0_3, %c0_4] : memref<1x64xf32, #tpu.memory_space<vmem>>, vector<1x64xf32>
    %4 = vector.broadcast %3 : vector<1x64xf32> to vector<2x64xf32>
    %5 = arith.addf %2, %4 : vector<2x64xf32>
    %6 = arith.negf %5 : vector<2x64xf32>
    %7 = math.exp %6 : vector<2x64xf32>
    %cst_5 = arith.constant 1.000000e+00 : f32
    %8 = vector.broadcast %cst_5 : f32 to vector<2x64xf32>
    %9 = arith.addf %8, %7 : vector<2x64xf32>
    %10 = arith.divf %8, %9 : vector<2x64xf32>
    %11 = arith.mulf %5, %10 : vector<2x64xf32>
    %c0_6 = arith.constant 0 : index
    %c0_7 = arith.constant 0 : index
    %12 = vector.load %arg4[%c0_6, %c0_7] : memref<64x32xf32, #tpu.memory_space<vmem>>, vector<64x32xf32>
    %cst_8 = arith.constant dense<0.000000e+00> : vector<2x32xf32>
    %13 = tpu.matmul %11, %12, %cst_8 {dimension_numbers = #tpu.dot_dimension_numbers<[1], [0], [0], [1], [0, 0, 1, 1], [], []>} : vector<2x64xf32>, vector<64x32xf32>, vector<2x32xf32> -> vector<2x32xf32>
    %c0_9 = arith.constant 0 : index
    %c0_10 = arith.constant 0 : index
    %14 = vector.load %arg5[%c0_9, %c0_10] : memref<1x32xf32, #tpu.memory_space<vmem>>, vector<1x32xf32>
    %15 = vector.broadcast %14 : vector<1x32xf32> to vector<2x32xf32>
    %16 = arith.addf %13, %15 : vector<2x32xf32>
    %c0_11 = arith.constant 0 : index
    %c0_12 = arith.constant 0 : index
    %17 = vector.load %arg1[%c0_11, %c0_12] : memref<2x1xf32, #tpu.memory_space<vmem>>, vector<2x1xf32>
    %c0_13 = arith.constant 0 : index
    %c0_14 = arith.constant 0 : index
    %18 = vector.load %arg6[%c0_13, %c0_14] : memref<1x64xf32, #tpu.memory_space<vmem>>, vector<1x64xf32>
    %cst_15 = arith.constant dense<0.000000e+00> : vector<2x64xf32>
    %19 = tpu.matmul %17, %18, %cst_15 {dimension_numbers = #tpu.dot_dimension_numbers<[1], [0], [0], [1], [0, 0, 1, 1], [], []>} : vector<2x1xf32>, vector<1x64xf32>, vector<2x64xf32> -> vector<2x64xf32>
    %c0_16 = arith.constant 0 : index
    %c0_17 = arith.constant 0 : index
    %20 = vector.load %arg7[%c0_16, %c0_17] : memref<1x64xf32, #tpu.memory_space<vmem>>, vector<1x64xf32>
    %21 = vector.broadcast %20 : vector<1x64xf32> to vector<2x64xf32>
    %22 = arith.addf %19, %21 : vector<2x64xf32>
    %23 = arith.negf %22 : vector<2x64xf32>
    %24 = math.exp %23 : vector<2x64xf32>
    %cst_18 = arith.constant 1.000000e+00 : f32
    %25 = vector.broadcast %cst_18 : f32 to vector<2x64xf32>
    %26 = arith.addf %25, %24 : vector<2x64xf32>
    %27 = arith.divf %25, %26 : vector<2x64xf32>
    %28 = arith.mulf %22, %27 : vector<2x64xf32>
    %c0_19 = arith.constant 0 : index
    %c0_20 = arith.constant 0 : index
    %29 = vector.load %arg8[%c0_19, %c0_20] : memref<64x32xf32, #tpu.memory_space<vmem>>, vector<64x32xf32>
    %cst_21 = arith.constant dense<0.000000e+00> : vector<2x32xf32>
    %30 = tpu.matmul %28, %29, %cst_21 {dimension_numbers = #tpu.dot_dimension_numbers<[1], [0], [0], [1], [0, 0, 1, 1], [], []>} : vector<2x64xf32>, vector<64x32xf32>, vector<2x32xf32> -> vector<2x32xf32>
    %c0_22 = arith.constant 0 : index
    %c0_23 = arith.constant 0 : index
    %31 = vector.load %arg9[%c0_22, %c0_23] : memref<1x32xf32, #tpu.memory_space<vmem>>, vector<1x32xf32>
    %32 = vector.broadcast %31 : vector<1x32xf32> to vector<2x32xf32>
    %33 = arith.addf %30, %32 : vector<2x32xf32>
    %34 = arith.addf %16, %33 : vector<2x32xf32>
    %c0_24 = arith.constant 0 : index
    %c0_25 = arith.constant 0 : index
    %35 = vector.load %arg10[%c0_24, %c0_25] : memref<2x32xf32, #tpu.memory_space<vmem>>, vector<2x32xf32>
    tpu.vector_store %arg10[%c0_24, %c0_25], %34 {strides = array<i32>} : memref<2x32xf32, #tpu.memory_space<vmem>>, vector<2x32xf32>,
    return
  }
}

</mosaic_0001>

<llo_original>
// kernel: tpu_custom_call.1
$region0: #{tpu_custom_call.1}
  #allocation0 [shape = 'u32[]', space=smem, size = 0x4, offset = 0x4, fixed_abs, tag = 'smem constant byte address 0x4 - core index']
  #allocation1 [shape = 'u32[144,128]{1,0:T(1,128)}', space=vmem, size = 0x12000, scoped, tag = 'internal scratch']
  %s0 = inlined_call_operand.vmem [shape: f32[2,32], index: 0, kind: input, shape index: {}]
  %s1 = inlined_call_operand.vmem [shape: f32[2,1], index: 1, kind: input, shape index: {}]
  %s2 = inlined_call_operand.vmem [shape: f32[32,64], index: 2, kind: input, shape index: {}]
  %s3 = inlined_call_operand.vmem [shape: f32[1,64], index: 3, kind: input, shape index: {}]
  %s4 = inlined_call_operand.vmem [shape: f32[64,32], index: 4, kind: input, shape index: {}]
  %s5 = inlined_call_operand.vmem [shape: f32[1,32], index: 5, kind: input, shape index: {}]
  %s6 = inlined_call_operand.vmem [shape: f32[1,64], index: 6, kind: input, shape index: {}]
  %s7 = inlined_call_operand.vmem [shape: f32[1,64], index: 7, kind: input, shape index: {}]
  %s8 = inlined_call_operand.vmem [shape: f32[64,32], index: 8, kind: input, shape index: {}]
  %s9 = inlined_call_operand.vmem [shape: f32[1,32], index: 9, kind: input, shape index: {}]
  %s10 = inlined_call_operand.hbm [shape: f32[2,32], index: 10, kind: output, shape index: {}]
  %s11 = sld [smem:[#allocation0]]
  $region50: #{tpu_custom_call.1} parent=0
    _
  %s13 = ssub.s32 1, %s11
  %s14 = scalar_select 0, %s13, %s11
  $region1: #{tpu_custom_call.1} parent=0
    #allocation2 [shape = 'u8[1024]{0}', space=vmem, size = 0x400, scoped, tag = 'output window, operand 0, single buffered']
    #allocation3 [shape = 's32[1]{0}', space=sflag, size = 0x4, scoped, tag = 'scoped memory for tpu_custom_call.1']
    %15 = vsyncpa [#allocation3], 0
    // Predicated region
    $region2: #{tpu_custom_call.1} parent=1 // pred_check
      _
    $region3: #{tpu_custom_call.1} parent=1 // pred_check_branch
      %17 = sbr.rel (0) target = $region5
    $region4: #{tpu_custom_call.1} parent=1 // pred_region
      _
    $region5: #{tpu_custom_call.1} parent=1 // pred_fallthru
      _
    // Predicated region
    $region6: #{tpu_custom_call.1} parent=1 // pred_check
      _
    $region7: #{tpu_custom_call.1} parent=1 // pred_check_branch
      %19 = sbr.rel (0) target = $region9
    $region8: #{tpu_custom_call.1} parent=1 // pred_region
      _
    $region9: #{tpu_custom_call.1} parent=1 // pred_fallthru
      _
    // Predicated region
    $region10: #{tpu_custom_call.1} parent=1 // pred_check
      _
    $region11: #{tpu_custom_call.1} parent=1 // pred_check_branch
      %21 = sbr.rel (0) target = $region13
    $region12: #{tpu_custom_call.1} parent=1 // pred_region
      _
    $region13: #{tpu_custom_call.1} parent=1 // pred_fallthru
      _
    // Predicated region
    $region14: #{tpu_custom_call.1} parent=1 // pred_check
      _
    $region15: #{tpu_custom_call.1} parent=1 // pred_check_branch
      %23 = sbr.rel (0) target = $region17
    $region16: #{tpu_custom_call.1} parent=1 // pred_region
      _
    $region17: #{tpu_custom_call.1} parent=1 // pred_fallthru
      _
    // Predicated region
    $region18: #{tpu_custom_call.1} parent=1 // pred_check
      _
    $region19: #{tpu_custom_call.1} parent=1 // pred_check_branch
      %25 = sbr.rel (0) target = $region21
    $region20: #{tpu_custom_call.1} parent=1 // pred_region
      _
    $region21: #{tpu_custom_call.1} parent=1 // pred_fallthru
      _
    // Predicated region
    $region22: #{tpu_custom_call.1} parent=1 // pred_check
      _
    $region23: #{tpu_custom_call.1} parent=1 // pred_check_branch
      %27 = sbr.rel (0) target = $region25
    $region24: #{tpu_custom_call.1} parent=1 // pred_region
      _
    $region25: #{tpu_custom_call.1} parent=1 // pred_fallthru
      _
    // Predicated region
    $region26: #{tpu_custom_call.1} parent=1 // pred_check
      _
    $region27: #{tpu_custom_call.1} parent=1 // pred_check_branch
      %29 = sbr.rel (0) target = $region29
    $region28: #{tpu_custom_call.1} parent=1 // pred_region
      _
    $region29: #{tpu_custom_call.1} parent=1 // pred_fallthru
      _
    // Predicated region
    $region30: #{tpu_custom_call.1} parent=1 // pred_check
      _
    $region31: #{tpu_custom_call.1} parent=1 // pred_check_branch
      %31 = sbr.rel (0) target = $region33
    $region32: #{tpu_custom_call.1} parent=1 // pred_region
      _
    $region33: #{tpu_custom_call.1} parent=1 // pred_fallthru
      _
    // Predicated region
    $region34: #{tpu_custom_call.1} parent=1 // pred_check
      _
    $region35: #{tpu_custom_call.1} parent=1 // pred_check_branch
      %33 = sbr.rel (0) target = $region37
    $region36: #{tpu_custom_call.1} parent=1 // pred_region
      _
    $region37: #{tpu_custom_call.1} parent=1 // pred_fallthru
      _
    // Predicated region
    $region38: #{tpu_custom_call.1} parent=1 // pred_check
      _
    $region39: #{tpu_custom_call.1} parent=1 // pred_check_branch
      %35 = sbr.rel (0) target = $region41
    $region40: #{tpu_custom_call.1} parent=1 // pred_region
      _
    $region41: #{tpu_custom_call.1} parent=1 // pred_fallthru
      _
    %v36 = vld [vmem:[%s0] sm:$0x3]
    %v37 = vld [vmem:[%s2] sm:$0xff]
    %v38 = vld [vmem:[%s2 + $0x8] sm:$0xff]
    %v39 = vld [vmem:[%s2 + $0x10] sm:$0xff]
    %v40 = vld [vmem:[%s2 + $0x18] sm:$0xff]
    %v41 = vld [vmem:[%s3] sm:$0x1]
    %v43 = vlaneseq
    %v44 = vshrl.u32 %v43, 7
    %v45 = vsub.s32 0, %v44
    %v46 = vrot.slane %v41, %v45
    %vm48 = vcmask 261120
    %v50 = vsel %vm48, %v36, 0
    %52 = vmatprep.subr.mxu0 0.0
    %53 = vmatpush1.msra.mxu0 %v37
    %54 = vmatprep.subr.mxu0 0.0
    %55 = vmatpush1.msra.mxu0 %v38
    %56 = vmatprep.subr.mxu0 0.0
    %57 = vmatpush1.msra.mxu0 %v39
    %58 = vmatprep.subr.mxu0 0.0
    %59 = vmatpush1.msra.mxu0 %v40
    %60 = vmatprep.subr.mxu0 0.0
    %61 = vmatpush1.msra.mxu0 0.0
    %62 = vmatprep.subr.mxu0 0.0
    %63 = vmatpush1.msra.mxu0 0.0
    %64 = vmatprep.subr.mxu0 0.0
    %65 = vmatpush1.msra.mxu0 0.0
    %66 = vmatprep.subr.mxu0 0.0
    %67 = vmatpush1.msra.mxu0 0.0
    %68 = vmatprep.subr.mxu0 0.0
    %69 = vmatpush1.msra.mxu0 0.0
    %70 = vmatprep.subr.mxu0 0.0
    %71 = vmatpush1.msra.mxu0 0.0
    %72 = vmatprep.subr.mxu0 0.0
    %73 = vmatpush1.msra.mxu0 0.0
    %74 = vmatprep.subr.mxu0 0.0
    %75 = vmatpush1.msra.mxu0 0.0
    %76 = vmatprep.subr.mxu0 0.0
    %77 = vmatpush1.msra.mxu0 0.0
    %78 = vmatprep.subr.mxu0 0.0
    %79 = vmatpush1.msra.mxu0 0.0
    %80 = vmatprep.subr.mxu0 0.0
    %81 = vmatpush1.msra.mxu0 0.0
    %82 = vmatprep.subr.mxu0 0.0
    %83 = vmatpush1.msra.mxu0 0.0
    %84 = vmatprep.subr.mxu0 0.0
    %85 = vmatpush1.msra.mxu0 0.0
    %86 = vmatprep.subr.mxu0 0.0
    %87 = vmatpush1.msra.mxu0 0.0
    %88 = vmatprep.subr.mxu0 0.0
    %89 = vmatpush1.msra.mxu0 0.0
    %90 = vmatprep.subr.mxu0 0.0
    %91 = vmatpush1.msra.mxu0 0.0
    %92 = vmatprep.subr.mxu0 0.0
    %93 = vmatpush1.msra.mxu0 0.0
    %94 = vmatprep.subr.mxu0 0.0
    %95 = vmatpush1.msra.mxu0 0.0
    %96 = vmatprep.subr.mxu0 0.0
    %97 = vmatpush1.msra.mxu0 0.0
    %98 = vmatprep.subr.mxu0 0.0
    %99 = vmatpush1.msra.mxu0 0.0
    %100 = vmatprep.subr.mxu0 0.0
    %101 = vmatpush1.msra.mxu0 0.0
    %102 = vmatprep.subr.mxu0 0.0
    %103 = vmatpush1.msra.mxu0 0.0
    %104 = vmatprep.subr.mxu0 0.0
    %105 = vmatpush1.msra.mxu0 0.0
    %106 = vmatprep.subr.mxu0 0.0
    %107 = vmatpush1.msra.mxu0 0.0
    %108 = vmatprep.subr.mxu0 0.0
    %109 = vmatpush1.msra.mxu0 0.0
    %110 = vmatprep.subr.mxu0 0.0
    %111 = vmatpush1.msra.mxu0 0.0
    %112 = vmatprep.subr.mxu0 0.0
    %113 = vmatpush1.msra.mxu0 0.0
    %114 = vmatprep.subr.mxu0 0.0
    %115 = vmatpush1.msra.mxu0 0.0
    %116 = vmatprep.mubr.f32.mxu0 0.0
    %117 = vmatmul.mubr.f32.gmra.mrb[0].mxu0 %v50
    %v118 = vpop.f32.mrb[0].mxu0
    %v119 = vadd.f32 %v46, %v118
    %v120 = vpop.f32.mrb[0].mxu0
    %121 = vdwg.mxu0
    %v122 = vxor.u32 %v119, 2147483648
    %v123 = vmul.f32 %v122, 1.442695
    %v124 = vpow.pop %v123
    %v125 = vadd.f32 %v124, 1.0
    %v126 = vrcp.pop %v125
    %v127 = vmul.f32 1.0, %v126
    %v128 = vmul.f32 %v119, %v127
    %v129 = vld [vmem:[%s4] sm:$0xff]
    %v130 = vld [vmem:[%s4 + $0x8] sm:$0xff]
    %v131 = vld [vmem:[%s4 + $0x10] sm:$0xff]
    %v132 = vld [vmem:[%s4 + $0x18] sm:$0xff]
    %v133 = vld [vmem:[%s4 + $0x20] sm:$0xff]
    %v134 = vld [vmem:[%s4 + $0x28] sm:$0xff]
    %v135 = vld [vmem:[%s4 + $0x30] sm:$0xff]
    %v136 = vld [vmem:[%s4 + $0x38] sm:$0xff]
    %v137 = vld [vmem:[%s5] sm:$0x1]
    %v139 = vlaneseq
    %v140 = vshrl.u32 %v139, 7
    %v141 = vsub.s32 0, %v140
    %v142 = vrot.slane %v137, %v141
    %vm144 = vcmask 523264
    %v146 = vsel %vm144, %v128, 0
    %148 = vmatprep.subr.mxu0 0.0
    %149 = vmatpush1.msra.mxu0 %v129
    %150 = vmatprep.subr.mxu0 0.0
    %151 = vmatpush1.msra.mxu0 %v130
    %152 = vmatprep.subr.mxu0 0.0
    %153 = vmatpush1.msra.mxu0 %v131
    %154 = vmatprep.subr.mxu0 0.0
    %155 = vmatpush1.msra.mxu0 %v132
    %156 = vmatprep.subr.mxu0 0.0
    %157 = vmatpush1.msra.mxu0 %v133
    %158 = vmatprep.subr.mxu0 0.0
    %159 = vmatpush1.msra.mxu0 %v134
    %160 = vmatprep.subr.mxu0 0.0
    %161 = vmatpush1.msra.mxu0 %v135
    %162 = vmatprep.subr.mxu0 0.0
    %163 = vmatpush1.msra.mxu0 %v136
    %164 = vmatprep.subr.mxu0 0.0
    %165 = vmatpush1.msra.mxu0 0.0
    %166 = vmatprep.subr.mxu0 0.0
    %167 = vmatpush1.msra.mxu0 0.0
    %168 = vmatprep.subr.mxu0 0.0
    %169 = vmatpush1.msra.mxu0 0.0
    %170 = vmatprep.subr.mxu0 0.0
    %171 = vmatpush1.msra.mxu0 0.0
    %172 = vmatprep.subr.mxu0 0.0
    %173 = vmatpush1.msra.mxu0 0.0
    %174 = vmatprep.subr.mxu0 0.0
    %175 = vmatpush1.msra.mxu0 0.0
    %176 = vmatprep.subr.mxu0 0.0
    %177 = vmatpush1.msra.mxu0 0.0
    %178 = vmatprep.subr.mxu0 0.0
    %179 = vmatpush1.msra.mxu0 0.0
    %180 = vmatprep.subr.mxu0 0.0
    %181 = vmatpush1.msra.mxu0 0.0
    %182 = vmatprep.subr.mxu0 0.0
    %183 = vmatpush1.msra.mxu0 0.0
    %184 = vmatprep.subr.mxu0 0.0
    %185 = vmatpush1.msra.mxu0 0.0
    %186 = vmatprep.subr.mxu0 0.0
    %187 = vmatpush1.msra.mxu0 0.0
    %188 = vmatprep.subr.mxu0 0.0
    %189 = vmatpush1.msra.mxu0 0.0
    %190 = vmatprep.subr.mxu0 0.0
    %191 = vmatpush1.msra.mxu0 0.0
    %192 = vmatprep.subr.mxu0 0.0
    %193 = vmatpush1.msra.mxu0 0.0
    %194 = vmatprep.subr.mxu0 0.0
    %195 = vmatpush1.msra.mxu0 0.0
    %196 = vmatprep.subr.mxu0 0.0
    %197 = vmatpush1.msra.mxu0 0.0
    %198 = vmatprep.subr.mxu0 0.0
    %199 = vmatpush1.msra.mxu0 0.0
    %200 = vmatprep.subr.mxu0 0.0
    %201 = vmatpush1.msra.mxu0 0.0
    %202 = vmatprep.subr.mxu0 0.0
    %203 = vmatpush1.msra.mxu0 0.0
    %204 = vmatprep.subr.mxu0 0.0
    %205 = vmatpush1.msra.mxu0 0.0
    %206 = vmatprep.subr.mxu0 0.0
    %207 = vmatpush1.msra.mxu0 0.0
    %208 = vmatprep.subr.mxu0 0.0
    %209 = vmatpush1.msra.mxu0 0.0
    %210 = vmatprep.subr.mxu0 0.0
    %211 = vmatpush1.msra.mxu0 0.0
    %212 = vmatprep.mubr.f32.mxu0 0.0
    %213 = vmatmul.mubr.f32.gmra.mrb[0].mxu0 %v146
    %v214 = vpop.f32.mrb[0].mxu0
    %v215 = vadd.f32 %v142, %v214
    %v216 = vpop.f32.mrb[0].mxu0
    %217 = vdwg.mxu0
    %v218 = vld [vmem:[%s1] sm:$0x3]
    %v219 = vld [vmem:[%s6] sm:$0x1]
    %v220 = vld [vmem:[%s7] sm:$0x1]
    %v222 = vlaneseq
    %v223 = vshrl.u32 %v222, 7
    %v224 = vsub.s32 0, %v223
    %v225 = vrot.slane %v220, %v224
    %vm227 = vcmask 7168
    %v229 = vsel %vm227, %v218, 0
    %vm231 = vcmask 1040384
    %v233 = vsel %vm231, %v219, 0
    %235 = vmatprep.subr.mxu0 0.0
    %236 = vmatpush1.msra.mxu0 %v233
    %237 = vmatprep.subr.mxu0 0.0
    %238 = vmatpush1.msra.mxu0 0.0
    %239 = vmatprep.subr.mxu0 0.0
    %240 = vmatpush1.msra.mxu0 0.0
    %241 = vmatprep.subr.mxu0 0.0
    %242 = vmatpush1.msra.mxu0 0.0
    %243 = vmatprep.subr.mxu0 0.0
    %244 = vmatpush1.msra.mxu0 0.0
    %245 = vmatprep.subr.mxu0 0.0
    %246 = vmatpush1.msra.mxu0 0.0
    %247 = vmatprep.subr.mxu0 0.0
    %248 = vmatpush1.msra.mxu0 0.0
    %249 = vmatprep.subr.mxu0 0.0
    %250 = vmatpush1.msra.mxu0 0.0
    %251 = vmatprep.subr.mxu0 0.0
    %252 = vmatpush1.msra.mxu0 0.0
    %253 = vmatprep.subr.mxu0 0.0
    %254 = vmatpush1.msra.mxu0 0.0
    %255 = vmatprep.subr.mxu0 0.0
    %256 = vmatpush1.msra.mxu0 0.0
    %257 = vmatprep.subr.mxu0 0.0
    %258 = vmatpush1.msra.mxu0 0.0
    %259 = vmatprep.subr.mxu0 0.0
    %260 = vmatpush1.msra.mxu0 0.0
    %261 = vmatprep.subr.mxu0 0.0
    %262 = vmatpush1.msra.mxu0 0.0
    %263 = vmatprep.subr.mxu0 0.0
    %264 = vmatpush1.msra.mxu0 0.0
    %265 = vmatprep.subr.mxu0 0.0
    %266 = vmatpush1.msra.mxu0 0.0
    %267 = vmatprep.subr.mxu0 0.0
    %268 = vmatpush1.msra.mxu0 0.0
    %269 = vmatprep.subr.mxu0 0.0
    %270 = vmatpush1.msra.mxu0 0.0
    %271 = vmatprep.subr.mxu0 0.0
    %272 = vmatpush1.msra.mxu0 0.0
    %273 = vmatprep.subr.mxu0 0.0
    %274 = vmatpush1.msra.mxu0 0.0
    %275 = vmatprep.subr.mxu0 0.0
    %276 = vmatpush1.msra.mxu0 0.0
    %277 = vmatprep.subr.mxu0 0.0
    %278 = vmatpush1.msra.mxu0 0.0
    %279 = vmatprep.subr.mxu0 0.0
    %280 = vmatpush1.msra.mxu0 0.0
    %281 = vmatprep.subr.mxu0 0.0
    %282 = vmatpush1.msra.mxu0 0.0
    %283 = vmatprep.subr.mxu0 0.0
    %284 = vmatpush1.msra.mxu0 0.0
    %285 = vmatprep.subr.mxu0 0.0
    %286 = vmatpush1.msra.mxu0 0.0
    %287 = vmatprep.subr.mxu0 0.0
    %288 = vmatpush1.msra.mxu0 0.0
    %289 = vmatprep.subr.mxu0 0.0
    %290 = vmatpush1.msra.mxu0 0.0
    %291 = vmatprep.subr.mxu0 0.0
    %292 = vmatpush1.msra.mxu0 0.0
    %293 = vmatprep.subr.mxu0 0.0
    %294 = vmatpush1.msra.mxu0 0.0
    %295 = vmatprep.subr.mxu0 0.0
    %296 = vmatpush1.msra.mxu0 0.0
    %297 = vmatprep.subr.mxu0 0.0
    %298 = vmatpush1.msra.mxu0 0.0
    %299 = vmatprep.mubr.f32.mxu0 0.0
    %300 = vmatmul.mubr.f32.gmra.mrb[0].mxu0 %v229
    %v301 = vpop.f32.mrb[0].mxu0
    %v302 = vadd.f32 %v225, %v301
    %v303 = vpop.f32.mrb[0].mxu0
    %304 = vdwg.mxu0
    %v305 = vxor.u32 %v302, 2147483648
    %v306 = vmul.f32 %v305, 1.442695
    %v307 = vpow.pop %v306
    %v308 = vadd.f32 %v307, 1.0
    %v309 = vrcp.pop %v308
    %v310 = vmul.f32 1.0, %v309
    %v311 = vmul.f32 %v302, %v310
    %v312 = vld [vmem:[%s8] sm:$0xff]
    %v313 = vld [vmem:[%s8 + $0x8] sm:$0xff]
    %v314 = vld [vmem:[%s8 + $0x10] sm:$0xff]
    %v315 = vld [vmem:[%s8 + $0x18] sm:$0xff]
    %v316 = vld [vmem:[%s8 + $0x20] sm:$0xff]
    %v317 = vld [vmem:[%s8 + $0x28] sm:$0xff]
    %v318 = vld [vmem:[%s8 + $0x30] sm:$0xff]
    %v319 = vld [vmem:[%s8 + $0x38] sm:$0xff]
    %v320 = vld [vmem:[%s9] sm:$0x1]
    %v322 = vlaneseq
    %v323 = vshrl.u32 %v322, 7
    %v324 = vsub.s32 0, %v323
    %v325 = vrot.slane %v320, %v324
    %v328 = vsel %vm144, %v311, 0
    %330 = vmatprep.subr.mxu0 0.0
    %331 = vmatpush1.msra.mxu0 %v312
    %332 = vmatprep.subr.mxu0 0.0
    %333 = vmatpush1.msra.mxu0 %v313
    %334 = vmatprep.subr.mxu0 0.0
    %335 = vmatpush1.msra.mxu0 %v314
    %336 = vmatprep.subr.mxu0 0.0
    %337 = vmatpush1.msra.mxu0 %v315
    %338 = vmatprep.subr.mxu0 0.0
    %339 = vmatpush1.msra.mxu0 %v316
    %340 = vmatprep.subr.mxu0 0.0
    %341 = vmatpush1.msra.mxu0 %v317
    %342 = vmatprep.subr.mxu0 0.0
    %343 = vmatpush1.msra.mxu0 %v318
    %344 = vmatprep.subr.mxu0 0.0
    %345 = vmatpush1.msra.mxu0 %v319
    %346 = vmatprep.subr.mxu0 0.0
    %347 = vmatpush1.msra.mxu0 0.0
    %348 = vmatprep.subr.mxu0 0.0
    %349 = vmatpush1.msra.mxu0 0.0
    %350 = vmatprep.subr.mxu0 0.0
    %351 = vmatpush1.msra.mxu0 0.0
    %352 = vmatprep.subr.mxu0 0.0
    %353 = vmatpush1.msra.mxu0 0.0
    %354 = vmatprep.subr.mxu0 0.0
    %355 = vmatpush1.msra.mxu0 0.0
    %356 = vmatprep.subr.mxu0 0.0
    %357 = vmatpush1.msra.mxu0 0.0
    %358 = vmatprep.subr.mxu0 0.0
    %359 = vmatpush1.msra.mxu0 0.0
    %360 = vmatprep.subr.mxu0 0.0
    %361 = vmatpush1.msra.mxu0 0.0
    %362 = vmatprep.subr.mxu0 0.0
    %363 = vmatpush1.msra.mxu0 0.0
    %364 = vmatprep.subr.mxu0 0.0
    %365 = vmatpush1.msra.mxu0 0.0
    %366 = vmatprep.subr.mxu0 0.0
    %367 = vmatpush1.msra.mxu0 0.0
    %368 = vmatprep.subr.mxu0 0.0
    %369 = vmatpush1.msra.mxu0 0.0
    %370 = vmatprep.subr.mxu0 0.0
    %371 = vmatpush1.msra.mxu0 0.0
    %372 = vmatprep.subr.mxu0 0.0
    %373 = vmatpush1.msra.mxu0 0.0
    %374 = vmatprep.subr.mxu0 0.0
    %375 = vmatpush1.msra.mxu0 0.0
    %376 = vmatprep.subr.mxu0 0.0
    %377 = vmatpush1.msra.mxu0 0.0
    %378 = vmatprep.subr.mxu0 0.0
    %379 = vmatpush1.msra.mxu0 0.0
    %380 = vmatprep.subr.mxu0 0.0
    %381 = vmatpush1.msra.mxu0 0.0
    %382 = vmatprep.subr.mxu0 0.0
    %383 = vmatpush1.msra.mxu0 0.0
    %384 = vmatprep.subr.mxu0 0.0
    %385 = vmatpush1.msra.mxu0 0.0
    %386 = vmatprep.subr.mxu0 0.0
    %387 = vmatpush1.msra.mxu0 0.0
    %388 = vmatprep.subr.mxu0 0.0
    %389 = vmatpush1.msra.mxu0 0.0
    %390 = vmatprep.subr.mxu0 0.0
    %391 = vmatpush1.msra.mxu0 0.0
    %392 = vmatprep.subr.mxu0 0.0
    %393 = vmatpush1.msra.mxu0 0.0
    %394 = vmatprep.mubr.f32.mxu0 0.0
    %395 = vmatmul.mubr.f32.gmra.mrb[0].mxu0 %v328
    %v396 = vpop.f32.mrb[0].mxu0
    %v397 = vadd.f32 %v325, %v396
    %v398 = vpop.f32.mrb[0].mxu0
    %399 = vdwg.mxu0
    %v400 = vadd.f32 %v215, %v397
    %vm401 = vcmask 254976
    %402 = vst.msk [vmem:[#allocation2] sm:$0x3] %vm401, %v400
    // Predicated region
    $region42: #{tpu_custom_call.1} parent=1 // pred_check
      _
    $region43: #{tpu_custom_call.1} parent=1 // pred_check_branch
      %404 = sbr.rel (0) target = $region45
    $region44: #{tpu_custom_call.1} parent=1 // pred_region
      %s406 = ssub.s32 32, 32
      %407 = vsyncadd [#allocation3], %s406
      %s409 = sshll.u32 [#allocation2], 4
      %s410 = int_to_ptr.vmem [resolvable:$true] %s409
      %412 = dma.vmem_to_hbm [thread:$0]  %s410, 32, %s10, [#allocation3]
    $region45: #{tpu_custom_call.1} parent=1 // pred_fallthru
      _
    // Predicated region
    $region46: #{tpu_custom_call.1} parent=1 // pred_check
      _
    $region47: #{tpu_custom_call.1} parent=1 // pred_check_branch
      %414 = sbr.rel (0) target = $region49
    $region48: #{tpu_custom_call.1} parent=1 // pred_region
      %415 = dma.done [#allocation3], 32
    $region49: #{tpu_custom_call.1} parent=1 // pred_fallthru
      _
    %416 = vsyncpa [#allocation3], 1

</llo_original>
